<compile_context>
chip_gen: v5e
topology: v5e:2x2
jax: 0.10.0
libtpu: 0.0.40
codegen_flags: <defaults>
</compile_context>

<pallas_src>
import functools

import jax
import jax.numpy as jnp
from jax.experimental import pallas as pl
from jax.experimental.pallas import tpu as pltpu


_LANE = 128     # last (feature) dims padded to a multiple of this
_SUBLANE = 8    # node dim padded to a multiple of this


def _round_up(v, m):
    return ((v + m - 1) // m) * m


def _pad_to(a, target_shape):
    pads = [(0, t - s) for s, t in zip(a.shape, target_shape)]
    if all(p == (0, 0) for p in pads):
        return a
    return jnp.pad(a, pads)


# ----------------------------------------------------------------------------
# Pallas kernel (one grid step = TB batch elements)
# ----------------------------------------------------------------------------
def _gcn_kernel(x_ref, adj_ref, w_ref, *rest, missing_value, has_mask,
                has_bias, compute_dtype):
    # x_ref:    (TB, Np, Fin_p)   float32
    # adj_ref:  (Np, Np)          compute_dtype  (normalized adj, grid-invariant)
    # w_ref:    (Fin_p, Fout_p)   compute_dtype  (grid-invariant)
    # mask_ref: (TB, Np, 1)       float32        [only if has_mask]
    # bias_ref: (1, Fout_p)       float32        [only if has_bias]
    # o_ref:    (TB, Np, Fout_p)  float32
    o_ref = rest[-1]
    rest = rest[:-1]
    idx = 0
    mask_ref = None
    bias_ref = None
    if has_mask:
        mask_ref = rest[idx]
        idx += 1
    if has_bias:
        bias_ref = rest[idx]
        idx += 1

    tb, n, fin = x_ref.shape
    fout = o_ref.shape[-1]

    x = x_ref[...]                                    # (TB, Np, Fin_p) f32
    valid = x != missing_value                        # exact-equality missing test
    x_masked = jnp.where(valid, x, 0.0)

    # ---- stage 1: fold batch into M -> one wide MXU matmul, f32 accumulate ----
    support = jnp.dot(
        x_masked.reshape(tb * n, fin).astype(compute_dtype),
        w_ref[...],
        preferred_element_type=jnp.float32)           # (TB*Np, Fout_p) f32
    support = support.reshape(tb, n, fout).astype(compute_dtype)

    # ---- stage 2: shared A_norm applied per batch element (static unroll) ----
    adj = adj_ref[...]                                # hoisted out of the loop
    if has_mask:
        mask = mask_ref[...]
    if has_bias:
        bias = bias_ref[...]

    for b in range(tb):
        out_b = jnp.dot(adj, support[b],
                        preferred_element_type=jnp.float32)   # (Np, Fout_p)
        if has_mask:
            # PyTorch: output *= missing_mask * mask  (requires Fin == Fout,
            # same broadcast limitation as the original module).
            out_b = jnp.where(valid[b], out_b, 0.0) * mask[b]
        if has_bias:
            out_b = out_b + bias
        o_ref[b] = out_b.astype(o_ref.dtype)


# ----------------------------------------------------------------------------
# VMEM sizing helpers
# ----------------------------------------------------------------------------
def _vmem_estimate(tb, np_, fin_p, fout_p, has_mask, has_bias, ci):
    x_blk = tb * np_ * fin_p * 4
    o_blk = tb * np_ * fout_p * 4
    m_blk = tb * np_ * 4 if has_mask else 0
    adj_blk = np_ * np_ * ci
    w_blk = fin_p * fout_p * ci
    b_blk = fout_p * 4 if has_bias else 0
    support = tb * np_ * fout_p * 4
    # Conservative: every pipeline operand double-buffered + live intermediates.
    return 2 * (x_blk + o_blk + m_blk + adj_blk + w_blk + b_blk) + 2 * support


def _choose_batch_tile(batch, np_, fin_p, fout_p, has_mask, has_bias, ci,
                       budget_bytes, max_unroll=16, max_m=1024):
    best = 1
    for tb in range(1, min(batch, max_unroll) + 1):
        if batch % tb != 0 or tb * np_ > max_m:
            continue
        if _vmem_estimate(tb, np_, fin_p, fout_p, has_mask, has_bias,
                          ci) <= budget_bytes:
            best = tb
    return best


# ----------------------------------------------------------------------------
# Wrapper
# ----------------------------------------------------------------------------
def normalize_adjacency(adj):
    """D^-1/2 (A + I) D^-1/2, matching the PyTorch forward."""
    n = adj.shape[0]
    adj_with_self = adj + jnp.eye(n, dtype=adj.dtype)
    rowsum = adj_with_self.sum(axis=1)
    d_inv_sqrt = rowsum ** -0.5
    d_inv_sqrt = jnp.where(jnp.isinf(d_inv_sqrt), 0.0, d_inv_sqrt)
    # diag(d) @ A @ diag(d) == d[:, None] * A * d[None, :]
    return d_inv_sqrt[:, None] * adj_with_self * d_inv_sqrt[None, :]


def graph_convolution(x, adj, weight, bias=None, mask=None,
                      missing_value=-1.0, use_bf16=False):
    """Pallas implementation of GraphConvolution.forward (batched path).

    x:      [B, N, Fin]  float32
    adj:    [N, N]       float32
    weight: [Fin, Fout]  float32
    bias:   [Fout]       float32 or None
    mask:   [B, N, 1]    float32 or None
    use_bf16: cast matmul inputs to bf16 (f32 accumulation) for MXU speed;
              off by default to keep exact f32 parity with PyTorch.
    returns [B, N, Fout] float32
    """
    if x.ndim != 3:
        raise ValueError("expected batched input [B, N, Fin]")
    B, N, Fin = x.shape
    Fin_w, Fout = weight.shape
    if Fin != Fin_w:
        raise ValueError(
            f"Input features ({Fin}) don't match weight dimensions ({Fin_w})")
    if adj.shape[0] != N or adj.shape[1] != N:
        raise ValueError(
            f"Adjacency matrix dimension ({adj.shape[0]}) doesn't match "
            f"number of nodes ({N})")
    if mask is not None and Fin != Fout:
        raise ValueError(
            "masked path requires in_features == out_features (same combined-"
            "mask broadcast limitation as the PyTorch module)")

    compute_dtype = jnp.bfloat16 if use_bf16 else jnp.float32
    ci = jnp.dtype(compute_dtype).itemsize

    # Lane/sublane-friendly padded sizes (zero padding is exact for this op).
    Np = _round_up(N, _SUBLANE)
    Fin_p = _round_up(Fin, _LANE)
    Fout_p = _round_up(Fout, _LANE)

    norm_adj = normalize_adjacency(adj.astype(jnp.float32))
    adj_p = _pad_to(norm_adj, (Np, Np)).astype(compute_dtype)
    w_p = _pad_to(weight.astype(jnp.float32), (Fin_p, Fout_p)).astype(compute_dtype)
    x_p = _pad_to(x.astype(jnp.float32), (B, Np, Fin_p))   # keep f32 (exact == test)

    has_mask = mask is not None
    has_bias = bias is not None

    budget = 48 * 1024 * 1024   # safe block budget across v5e/v6e/v7x
    TB = _choose_batch_tile(B, Np, Fin_p, Fout_p, has_mask, has_bias, ci, budget)
    grid = (B // TB,)

    in_specs = [
        pl.BlockSpec((TB, Np, Fin_p), lambda i: (i, 0, 0)),   # x (batch-tiled)
        pl.BlockSpec((Np, Np), lambda i: (0, 0)),             # normalized adj
        pl.BlockSpec((Fin_p, Fout_p), lambda i: (0, 0)),      # weight
    ]
    args = [x_p, adj_p, w_p]
    if has_mask:
        mask_p = _pad_to(mask.astype(jnp.float32), (B, Np, 1))
        in_specs.append(pl.BlockSpec((TB, Np, 1), lambda i: (i, 0, 0)))
        args.append(mask_p)
    if has_bias:
        bias_p = _pad_to(bias.astype(jnp.float32).reshape(1, Fout), (1, Fout_p))
        in_specs.append(pl.BlockSpec((1, Fout_p), lambda i: (0, 0)))
        args.append(bias_p)

    out_spec = pl.BlockSpec((TB, Np, Fout_p), lambda i: (i, 0, 0))

    vmem_limit = int(min(
        max(2 * _vmem_estimate(TB, Np, Fin_p, Fout_p, has_mask, has_bias, ci),
            32 * 1024 * 1024),
        64 * 1024 * 1024))   # stay within v7x's 64 MiB physical VMEM

    kernel = functools.partial(
        _gcn_kernel,
        missing_value=float(missing_value),
        has_mask=has_mask,
        has_bias=has_bias,
        compute_dtype=compute_dtype)

    out_p = pl.pallas_call(
        kernel,
        out_shape=jax.ShapeDtypeStruct((B, Np, Fout_p), jnp.float32),
        grid_spec=pltpu.PrefetchScalarGridSpec(
            num_scalar_prefetch=0,
            grid=grid,
            in_specs=in_specs,
            out_specs=out_spec,
        ),
        compiler_params=pltpu.CompilerParams(
            dimension_semantics=("parallel",),
            vmem_limit_bytes=vmem_limit,
        ),
    )(*args)

    return out_p[:, :N, :Fout]


# ----------------------------------------------------------------------------
# Pure-JAX reference (mirrors the PyTorch forward) for validation
# ----------------------------------------------------------------------------
def graph_convolution_ref(x, adj, weight, bias=None, mask=None,
                          missing_value=-1.0):
    missing_mask = (x != missing_value).astype(jnp.float32)
    x_masked = x * missing_mask
    combined_mask = missing_mask * mask if mask is not None else missing_mask
    norm_adj = normalize_adjacency(adj)
    support = jnp.einsum("bnf,fo->bno", x_masked, weight)
    output = jnp.einsum("nm,bmo->bno", norm_adj, support)
    if mask is not None:
        output = output * combined_mask
    if bias is not None:
        output = output + bias
    return output


# ----------------------------------------------------------------------------
# Demo
# ----------------------------------------------------------------------------
if __name__ == "__main__":
    key = jax.random.PRNGKey(0)
    k_x, k_adj, k_w, k_m, k_drop = jax.random.split(key, 5)

    B, N = 2, 16
    IN_FEATURES = 32
    OUT_FEATURES = 32   # equal so the combined-mask broadcast matches PyTorch
    MISSING_VALUE = -1.0

    # Node features, with some entries set to the missing value.
    x = jax.random.normal(k_x, (B, N, IN_FEATURES), dtype=jnp.float32)
    drop = jax.random.bernoulli(k_drop, p=0.1, shape=(B, N, IN_FEATURES))
    x = jnp.where(drop, jnp.float32(MISSING_VALUE), x)

    # Symmetric 0/1 adjacency (no self loops; kernel glue adds them).
    a = (jax.random.uniform(k_adj, (N, N)) < 0.3).astype(jnp.float32)
    adj = jnp.maximum(a, a.T) * (1.0 - jnp.eye(N, dtype=jnp.float32))

    # Glorot (Xavier uniform) weight init, zero bias — deterministic.
    limit = (6.0 / (IN_FEATURES + OUT_FEATURES)) ** 0.5
    weight = jax.random.uniform(k_w, (IN_FEATURES, OUT_FEATURES),
                                dtype=jnp.float32, minval=-limit, maxval=limit)
    bias = jnp.zeros((OUT_FEATURES,), dtype=jnp.float32)

    # Validity mask [B, N, 1].
    mask = (jax.random.uniform(k_m, (B, N, 1)) < 0.9).astype(jnp.float32)

    # --- f32 path, mask + bias ---
    out = jax.block_until_ready(
        graph_convolution(x, adj, weight, bias=bias, mask=mask,
                          missing_value=MISSING_VALUE))
    ref = graph_convolution_ref(x, adj, weight, bias=bias, mask=mask,
                                missing_value=MISSING_VALUE)
    assert out.shape == (B, N, OUT_FEATURES)
    assert jnp.allclose(out, ref, atol=1e-5, rtol=1e-5), "mismatch (masked f32)"

    # --- f32 path, no mask, no bias (bias-free kernel variant) ---
    out_nm = jax.block_until_ready(
        graph_convolution(x, adj, weight, bias=None, mask=None,
                          missing_value=MISSING_VALUE))
    ref_nm = graph_convolution_ref(x, adj, weight, bias=None, mask=None,
                                   missing_value=MISSING_VALUE)
    assert jnp.allclose(out_nm, ref_nm, atol=1e-5, rtol=1e-5), "mismatch (nomask f32)"

    # --- opt-in bf16 MXU inputs (f32 accumulation), looser tolerance ---
    out_bf = jax.block_until_ready(
        graph_convolution(x, adj, weight, bias=bias, mask=mask,
                          missing_value=MISSING_VALUE, use_bf16=True))
    assert jnp.allclose(out_bf, ref, atol=5e-2, rtol=5e-2), "mismatch (masked bf16)"

    print("KERNEL_OK")
</pallas_src>

<mosaic_0001>
module attributes {stable_mosaic.version = 11 : i64} {
  func.func @_gcn_kernel(%arg0: i32, %arg1: memref<2x16x128xf32, #tpu.memory_space<vmem>>, %arg2: memref<16x16xf32, #tpu.memory_space<vmem>>, %arg3: memref<128x128xf32, #tpu.memory_space<vmem>>, %arg4: memref<2x16x1xf32, #tpu.memory_space<vmem>>, %arg5: memref<1x128xf32, #tpu.memory_space<vmem>>, %arg6: memref<2x16x128xf32, #tpu.memory_space<vmem>>) attributes {dimension_semantics = [#tpu.dimension_semantics<parallel>], iteration_bounds = array<i64: 1>, scalar_prefetch = 0 : i64, scratch_operands = 0 : i64, tpu.core_type = #tpu.core_type<tc>, window_params = [{transform_indices = @transform_0, window_bounds = array<i64: 2, 16, 128>}, {pipeline_mode = #tpu.pipeline_mode<synchronous>, transform_indices = @transform_1, window_bounds = array<i64: 16, 16>}, {pipeline_mode = #tpu.pipeline_mode<synchronous>, transform_indices = @transform_2, window_bounds = array<i64: 128, 128>}, {transform_indices = @transform_3, window_bounds = array<i64: 2, 16, 1>}, {pipeline_mode = #tpu.pipeline_mode<synchronous>, transform_indices = @transform_4, window_bounds = array<i64: 1, 128>}, {transform_indices = @transform_5, window_bounds = array<i64: 2, 16, 128>}]} {
    %c0 = arith.constant 0 : index
    %c0_0 = arith.constant 0 : index
    %c0_1 = arith.constant 0 : index
    %0 = vector.load %arg1[%c0, %c0_0, %c0_1] : memref<2x16x128xf32, #tpu.memory_space<vmem>>, vector<2x16x128xf32>
    %cst = arith.constant -1.000000e+00 : f32
    %1 = vector.broadcast %cst : f32 to vector<2x16x128xf32>
    %2 = arith.cmpf one, %0, %1 : vector<2x16x128xf32>
    %cst_2 = arith.constant 0.000000e+00 : f32
    %3 = vector.broadcast %cst_2 : f32 to vector<2x16x128xf32>
    %4 = arith.select %2, %0, %3 : vector<2x16x128xi1>, vector<2x16x128xf32>
    %5 = vector.shape_cast %4 : vector<2x16x128xf32> to vector<32x128xf32>
    %c0_3 = arith.constant 0 : index
    %c0_4 = arith.constant 0 : index
    %6 = vector.load %arg3[%c0_3, %c0_4] : memref<128x128xf32, #tpu.memory_space<vmem>>, vector<128x128xf32>
    %cst_5 = arith.constant dense<0.000000e+00> : vector<32x128xf32>
    %7 = tpu.matmul %5, %6, %cst_5 {dimension_numbers = #tpu.dot_dimension_numbers<[1], [0], [0], [1], [0, 0, 1, 1], [], []>} : vector<32x128xf32>, vector<128x128xf32>, vector<32x128xf32> -> vector<32x128xf32>
    %8 = vector.shape_cast %7 : vector<32x128xf32> to vector<2x16x128xf32>
    %c0_6 = arith.constant 0 : index
    %c0_7 = arith.constant 0 : index
    %9 = vector.load %arg2[%c0_6, %c0_7] : memref<16x16xf32, #tpu.memory_space<vmem>>, vector<16x16xf32>
    %c0_8 = arith.constant 0 : index
    %c0_9 = arith.constant 0 : index
    %c0_10 = arith.constant 0 : index
    %10 = vector.load %arg4[%c0_8, %c0_9, %c0_10] : memref<2x16x1xf32, #tpu.memory_space<vmem>>, vector<2x16x1xf32>
    %c0_11 = arith.constant 0 : index
    %c0_12 = arith.constant 0 : index
    %11 = vector.load %arg5[%c0_11, %c0_12] : memref<1x128xf32, #tpu.memory_space<vmem>>, vector<1x128xf32>
    %12 = vector.extract_strided_slice %8 {offsets = [0, 0, 0], sizes = [1, 16, 128], strides = [1, 1, 1]} : vector<2x16x128xf32> to vector<1x16x128xf32>
    %13 = vector.shape_cast %12 : vector<1x16x128xf32> to vector<16x128xf32>
    %cst_13 = arith.constant dense<0.000000e+00> : vector<16x128xf32>
    %14 = tpu.matmul %9, %13, %cst_13 {dimension_numbers = #tpu.dot_dimension_numbers<[1], [0], [0], [1], [0, 0, 1, 1], [], []>} : vector<16x16xf32>, vector<16x128xf32>, vector<16x128xf32> -> vector<16x128xf32>
    %15 = vector.extract_strided_slice %2 {offsets = [0, 0, 0], sizes = [1, 16, 128], strides = [1, 1, 1]} : vector<2x16x128xi1> to vector<1x16x128xi1>
    %16 = vector.shape_cast %15 : vector<1x16x128xi1> to vector<16x128xi1>
    %cst_14 = arith.constant 0.000000e+00 : f32
    %17 = vector.broadcast %cst_14 : f32 to vector<16x128xf32>
    %18 = arith.select %16, %14, %17 : vector<16x128xi1>, vector<16x128xf32>
    %19 = vector.extract_strided_slice %10 {offsets = [0, 0, 0], sizes = [1, 16, 1], strides = [1, 1, 1]} : vector<2x16x1xf32> to vector<1x16x1xf32>
    %20 = vector.shape_cast %19 : vector<1x16x1xf32> to vector<16x1xf32>
    %21 = vector.broadcast %20 : vector<16x1xf32> to vector<16x128xf32>
    %22 = arith.mulf %18, %21 : vector<16x128xf32>
    %23 = vector.broadcast %11 : vector<1x128xf32> to vector<16x128xf32>
    %24 = arith.addf %22, %23 : vector<16x128xf32>
    %c0_15 = arith.constant 0 : index
    %c0_16 = arith.constant 0 : index
    %c0_17 = arith.constant 0 : index
    %25 = vector.load %arg6[%c0_15, %c0_16, %c0_17] : memref<2x16x128xf32, #tpu.memory_space<vmem>>, vector<1x16x128xf32>
    %26 = vector.shape_cast %25 : vector<1x16x128xf32> to vector<16x128xf32>
    %27 = vector.shape_cast %24 : vector<16x128xf32> to vector<1x16x128xf32>
    tpu.vector_store %arg6[%c0_15, %c0_16, %c0_17], %27 {strides = array<i32>} : memref<2x16x128xf32, #tpu.memory_space<vmem>>, vector<1x16x128xf32>,
    %28 = vector.extract_strided_slice %8 {offsets = [1, 0, 0], sizes = [1, 16, 128], strides = [1, 1, 1]} : vector<2x16x128xf32> to vector<1x16x128xf32>
    %29 = vector.shape_cast %28 : vector<1x16x128xf32> to vector<16x128xf32>
    %cst_18 = arith.constant dense<0.000000e+00> : vector<16x128xf32>
    %30 = tpu.matmul %9, %29, %cst_18 {dimension_numbers = #tpu.dot_dimension_numbers<[1], [0], [0], [1], [0, 0, 1, 1], [], []>} : vector<16x16xf32>, vector<16x128xf32>, vector<16x128xf32> -> vector<16x128xf32>
    %31 = vector.extract_strided_slice %2 {offsets = [1, 0, 0], sizes = [1, 16, 128], strides = [1, 1, 1]} : vector<2x16x128xi1> to vector<1x16x128xi1>
    %32 = vector.shape_cast %31 : vector<1x16x128xi1> to vector<16x128xi1>
    %cst_19 = arith.constant 0.000000e+00 : f32
    %33 = vector.broadcast %cst_19 : f32 to vector<16x128xf32>
    %34 = arith.select %32, %30, %33 : vector<16x128xi1>, vector<16x128xf32>
    %35 = vector.extract_strided_slice %10 {offsets = [1, 0, 0], sizes = [1, 16, 1], strides = [1, 1, 1]} : vector<2x16x1xf32> to vector<1x16x1xf32>
    %36 = vector.shape_cast %35 : vector<1x16x1xf32> to vector<16x1xf32>
    %37 = vector.broadcast %36 : vector<16x1xf32> to vector<16x128xf32>
    %38 = arith.mulf %34, %37 : vector<16x128xf32>
    %39 = vector.broadcast %11 : vector<1x128xf32> to vector<16x128xf32>
    %40 = arith.addf %38, %39 : vector<16x128xf32>
    %c1 = arith.constant 1 : index
    %c0_20 = arith.constant 0 : index
    %c0_21 = arith.constant 0 : index
    %41 = vector.load %arg6[%c1, %c0_20, %c0_21] : memref<2x16x128xf32, #tpu.memory_space<vmem>>, vector<1x16x128xf32>
    %42 = vector.shape_cast %41 : vector<1x16x128xf32> to vector<16x128xf32>
    %43 = vector.shape_cast %40 : vector<16x128xf32> to vector<1x16x128xf32>
    tpu.vector_store %arg6[%c1, %c0_20, %c0_21], %43 {strides = array<i32>} : memref<2x16x128xf32, #tpu.memory_space<vmem>>, vector<1x16x128xf32>,
    return
  }
  func.func @transform_0(%arg0: i32) -> (i32, i32, i32) {
    %c0_i32 = arith.constant 0 : i32
    %c0_i32_0 = arith.constant 0 : i32
    %c0_i32_1 = arith.constant 0 : i32
    return %arg0, %c0_i32, %c0_i32_0 : i32, i32, i32
  }
  func.func @transform_1(%arg0: i32) -> (i32, i32) {
    %c0_i32 = arith.constant 0 : i32
    %c0_i32_0 = arith.constant 0 : i32
    %c0_i32_1 = arith.constant 0 : i32
    return %c0_i32, %c0_i32_0 : i32, i32
  }
  func.func @transform_2(%arg0: i32) -> (i32, i32) {
    %c0_i32 = arith.constant 0 : i32
    %c0_i32_0 = arith.constant 0 : i32
    %c0_i32_1 = arith.constant 0 : i32
    return %c0_i32, %c0_i32_0 : i32, i32
  }
  func.func @transform_3(%arg0: i32) -> (i32, i32, i32) {
    %c0_i32 = arith.constant 0 : i32
    %c0_i32_0 = arith.constant 0 : i32
    %c0_i32_1 = arith.constant 0 : i32
    return %arg0, %c0_i32, %c0_i32_0 : i32, i32, i32
  }
  func.func @transform_4(%arg0: i32) -> (i32, i32) {
    %c0_i32 = arith.constant 0 : i32
    %c0_i32_0 = arith.constant 0 : i32
    %c0_i32_1 = arith.constant 0 : i32
    return %c0_i32, %c0_i32_0 : i32, i32
  }
  func.func @transform_5(%arg0: i32) -> (i32, i32, i32) {
    %c0_i32 = arith.constant 0 : i32
    %c0_i32_0 = arith.constant 0 : i32
    %c0_i32_1 = arith.constant 0 : i32
    return %arg0, %c0_i32, %c0_i32_0 : i32, i32, i32
  }
}

</mosaic_0001>

<llo_original>
// kernel: tpu_custom_call.1
$region0: #{tpu_custom_call.1}
  #allocation0 [shape = 'u32[]', space=smem, size = 0x4, offset = 0x4, fixed_abs, tag = 'smem constant byte address 0x4 - core index']
  #allocation1 [shape = 'u32[72,128]{1,0:T(1,128)}', space=vmem, size = 0x9000, scoped, tag = 'internal scratch']
  %s0 = inlined_call_operand.vmem [shape: f32[2,16,128], index: 0, kind: input, shape index: {}]
  %s1 = inlined_call_operand.hbm [shape: f32[16,16], index: 1, kind: input, shape index: {}]
  %s2 = inlined_call_operand.hbm [shape: f32[128,128], index: 2, kind: input, shape index: {}]
  %s3 = inlined_call_operand.vmem [shape: f32[2,16,1], index: 3, kind: input, shape index: {}]
  %s4 = inlined_call_operand.vmem [shape: f32[1,128], index: 4, kind: input, shape index: {}]
  %s5 = inlined_call_operand.hbm [shape: f32[2,16,128], index: 5, kind: output, shape index: {}]
  %s6 = sld [smem:[#allocation0]]
  $region38: #{tpu_custom_call.1} parent=0
    _
  %s8 = ssub.s32 1, %s6
  %s9 = scalar_select 0, %s8, %s6
  $region1: #{tpu_custom_call.1} parent=0
    #allocation2 [shape = 'u8[8192]{0}', space=vmem, size = 0x2000, scoped, tag = 'input window, operand 1, single buffered']
    #allocation3 [shape = 's32[1]{0}', space=sflag, size = 0x4, scoped, tag = 'scoped memory for tpu_custom_call.1']
    #allocation4 [shape = 's32[1]{0}', space=sflag, size = 0x4, scoped, tag = 'scoped memory for tpu_custom_call.1']
    #allocation5 [shape = 'u8[65536]{0}', space=vmem, size = 0x10000, scoped, tag = 'input window, operand 2, single buffered']
    #allocation6 [shape = 's32[1]{0}', space=sflag, size = 0x4, scoped, tag = 'scoped memory for tpu_custom_call.1']
    #allocation7 [shape = 'u8[16384]{0}', space=vmem, size = 0x4000, scoped, tag = 'output window, operand 0, single buffered']
    %10 = vsyncpa [#allocation3], 0
    %11 = vsyncpa [#allocation6], 0
    %12 = vsyncpa [#allocation4], 0
    // Predicated region
    $region2: #{tpu_custom_call.1} parent=1 // pred_check
      _
    $region3: #{tpu_custom_call.1} parent=1 // pred_check_branch
      %14 = sbr.rel (0) target = $region5
    $region4: #{tpu_custom_call.1} parent=1 // pred_region
      _
    $region5: #{tpu_custom_call.1} parent=1 // pred_fallthru
      _
    // Predicated region
    $region6: #{tpu_custom_call.1} parent=1 // pred_check
      _
    $region7: #{tpu_custom_call.1} parent=1 // pred_check_branch
      %16 = sbr.rel (0) target = $region9
    $region8: #{tpu_custom_call.1} parent=1 // pred_region
      %18 = vsyncadd [#allocation3], 0
      %s19 = sshll.u32 %s1, 4
      %s20 = int_to_ptr.hbm [resolvable:$true] %s19
      %s21 = sshll.u32 [#allocation2], 4
      %s22 = int_to_ptr.vmem [resolvable:$true] %s21
      %27 = dma.hbm_to_vmem [thread:$0]  %s20, 256, %s22, [#allocation3], 128, 128, 8
    $region9: #{tpu_custom_call.1} parent=1 // pred_fallthru
      _
    // Predicated region
    $region10: #{tpu_custom_call.1} parent=1 // pred_check
      _
    $region11: #{tpu_custom_call.1} parent=1 // pred_check_branch
      %29 = sbr.rel (0) target = $region13
    $region12: #{tpu_custom_call.1} parent=1 // pred_region
      %31 = vsyncadd [#allocation6], 0
      %s32 = sshll.u32 %s2, 4
      %s33 = int_to_ptr.hbm [resolvable:$true] %s32
      %s34 = sshll.u32 [#allocation5], 4
      %s35 = int_to_ptr.vmem [resolvable:$true] %s34
      %40 = dma.hbm_to_vmem [thread:$0]  %s33, 2048, %s35, [#allocation6], 128, 128, 8
    $region13: #{tpu_custom_call.1} parent=1 // pred_fallthru
      _
    // Predicated region
    $region14: #{tpu_custom_call.1} parent=1 // pred_check
      _
    $region15: #{tpu_custom_call.1} parent=1 // pred_check_branch
      %42 = sbr.rel (0) target = $region17
    $region16: #{tpu_custom_call.1} parent=1 // pred_region
      _
    $region17: #{tpu_custom_call.1} parent=1 // pred_fallthru
      _
    // Predicated region
    $region18: #{tpu_custom_call.1} parent=1 // pred_check
      _
    $region19: #{tpu_custom_call.1} parent=1 // pred_check_branch
      %44 = sbr.rel (0) target = $region21
    $region20: #{tpu_custom_call.1} parent=1 // pred_region
      _
    $region21: #{tpu_custom_call.1} parent=1 // pred_fallthru
      _
    // Predicated region
    $region22: #{tpu_custom_call.1} parent=1 // pred_check
      _
    $region23: #{tpu_custom_call.1} parent=1 // pred_check_branch
      %46 = sbr.rel (0) target = $region25
    $region24: #{tpu_custom_call.1} parent=1 // pred_region
      %48 = dma.done [#allocation3], 256
    $region25: #{tpu_custom_call.1} parent=1 // pred_fallthru
      _
    // Predicated region
    $region26: #{tpu_custom_call.1} parent=1 // pred_check
      _
    $region27: #{tpu_custom_call.1} parent=1 // pred_check_branch
      %50 = sbr.rel (0) target = $region29
    $region28: #{tpu_custom_call.1} parent=1 // pred_region
      %52 = dma.done [#allocation6], 2048
    $region29: #{tpu_custom_call.1} parent=1 // pred_fallthru
      _
    %v53 = vld [vmem:[%s0] sm:$0xff]
    %v54 = vld [vmem:[%s0 + $0x8] sm:$0xff]
    %v55 = vld [vmem:[%s0 + $0x10] sm:$0xff]
    %v56 = vld [vmem:[%s0 + $0x18] sm:$0xff]
    %vm57 = vcmp.ne.f32.partialorder %v53, -1.0
    %vm58 = vcmp.ne.f32.partialorder %v54, -1.0
    %vm59 = vcmp.ne.f32.partialorder %v55, -1.0
    %vm60 = vcmp.ne.f32.partialorder %v56, -1.0
    %v61 = vsel %vm57, %v53, 0.0
    %v62 = vsel %vm58, %v54, 0.0
    %v63 = vsel %vm59, %v55, 0.0
    %v64 = vsel %vm60, %v56, 0.0
    %v65 = vld [vmem:[#allocation5] sm:$0xff]
    %v66 = vld [vmem:[#allocation5 + $0x8] sm:$0xff]
    %v67 = vld [vmem:[#allocation5 + $0x10] sm:$0xff]
    %v68 = vld [vmem:[#allocation5 + $0x18] sm:$0xff]
    %v69 = vld [vmem:[#allocation5 + $0x20] sm:$0xff]
    %v70 = vld [vmem:[#allocation5 + $0x28] sm:$0xff]
    %v71 = vld [vmem:[#allocation5 + $0x30] sm:$0xff]
    %v72 = vld [vmem:[#allocation5 + $0x38] sm:$0xff]
    %v73 = vld [vmem:[#allocation5 + $0x40] sm:$0xff]
    %v74 = vld [vmem:[#allocation5 + $0x48] sm:$0xff]
    %v75 = vld [vmem:[#allocation5 + $0x50] sm:$0xff]
    %v76 = vld [vmem:[#allocation5 + $0x58] sm:$0xff]
    %v77 = vld [vmem:[#allocation5 + $0x60] sm:$0xff]
    %v78 = vld [vmem:[#allocation5 + $0x68] sm:$0xff]
    %v79 = vld [vmem:[#allocation5 + $0x70] sm:$0xff]
    %v80 = vld [vmem:[#allocation5 + $0x78] sm:$0xff]
    %81 = vmatpush.msra.mxu0 %v80
    %82 = vmatpush.msra.mxu0 %v79
    %83 = vmatpush.msra.mxu0 %v78
    %84 = vmatpush.msra.mxu0 %v77
    %85 = vmatpush.msra.mxu0 %v76
    %86 = vmatpush.msra.mxu0 %v75
    %87 = vmatpush.msra.mxu0 %v74
    %88 = vmatpush.msra.mxu0 %v73
    %89 = vmatpush.msra.mxu0 %v72
    %90 = vmatpush.msra.mxu0 %v71
    %91 = vmatpush.msra.mxu0 %v70
    %92 = vmatpush.msra.mxu0 %v69
    %93 = vmatpush.msra.mxu0 %v68
    %94 = vmatpush.msra.mxu0 %v67
    %95 = vmatpush.msra.mxu0 %v66
    %96 = vmatpush.msra.mxu0 %v65
    %97 = vmatmul.f32.gmra.mxu0 %v61
    %v98 = vpop.f32.mrf.mxu0
    %v99 = vadd.f32 0.0, %v98
    %100 = vmatmul.f32.gmra.mxu0 %v62
    %v101 = vpop.f32.mrf.mxu0
    %v102 = vadd.f32 0.0, %v101
    %103 = vmatmul.f32.gmra.mxu0 %v63
    %v104 = vpop.f32.mrf.mxu0
    %v105 = vadd.f32 0.0, %v104
    %106 = vmatmul.f32.gmra.mxu0 %v64
    %v107 = vpop.f32.mrf.mxu0
    %v108 = vadd.f32 0.0, %v107
    %109 = vdwg.mxu0
    %v110 = vld [vmem:[#allocation2] sm:$0xff]
    %v111 = vld [vmem:[#allocation2 + $0x8] sm:$0xff]
    %v112 = vld [vmem:[%s3] sm:$0xff]
    %v113 = vld [vmem:[%s3 + $0x8] sm:$0xff]
    %v114 = vld [vmem:[%s3 + $0x10] sm:$0xff]
    %v115 = vld [vmem:[%s3 + $0x18] sm:$0xff]
    %v116 = vld [vmem:[%s4] sm:$0x1]
    %vm117 = vcmask 130048
    %v119 = vsel %vm117, %v110, 0
    %v122 = vsel %vm117, %v111, 0
    %124 = vmatpush.msra.mxu0 0.0
    %125 = vmatpush.msra.mxu0 0.0
    %126 = vmatpush.msra.mxu0 0.0
    %127 = vmatpush.msra.mxu0 0.0
    %128 = vmatpush.msra.mxu0 0.0
    %129 = vmatpush.msra.mxu0 0.0
    %130 = vmatpush.msra.mxu0 0.0
    %131 = vmatpush.msra.mxu0 0.0
    %132 = vmatpush.msra.mxu0 0.0
    %133 = vmatpush.msra.mxu0 0.0
    %134 = vmatpush.msra.mxu0 0.0
    %135 = vmatpush.msra.mxu0 0.0
    %136 = vmatpush.msra.mxu0 0.0
    %137 = vmatpush.msra.mxu0 0.0
    %138 = vmatpush.msra.mxu0 %v102
    %139 = vmatpush.msra.mxu0 %v99
    %140 = vmatmul.f32.gmra.mxu0 %v119
    %v141 = vpop.f32.mrf.mxu0
    %v142 = vadd.f32 0.0, %v141
    %143 = vmatmul.f32.gmra.mxu0 %v122
    %v144 = vpop.f32.mrf.mxu0
    %v145 = vadd.f32 0.0, %v144
    %146 = vdwg.mxu0
    %v147 = vsel %vm57, %v142, 0.0
    %v148 = vsel %vm58, %v145, 0.0
    %150 = vset.pattern.permute.xlu0 0
    %151 = vperm.xlu0 %150, %v112
    %v152 = vpop.permute.xlu0 %151
    %155 = vset.pattern.permute.xlu0 0
    %156 = vperm.xlu0 %155, %v113
    %v157 = vpop.permute.xlu0 %156
    %v159 = vmul.f32 %v147, %v152
    %v160 = vmul.f32 %v148, %v157
    %v162 = vperm.slane %v116, 0
    %v164 = vadd.f32 %v159, %v162
    %v165 = vadd.f32 %v160, %v162
    %166 = vst [vmem:[#allocation7] sm:$0xff] %v164
    %167 = vst [vmem:[#allocation7 + $0x8] sm:$0xff] %v165
    %168 = vmatpush.msra.mxu0 0.0
    %169 = vmatpush.msra.mxu0 0.0
    %170 = vmatpush.msra.mxu0 0.0
    %171 = vmatpush.msra.mxu0 0.0
    %172 = vmatpush.msra.mxu0 0.0
    %173 = vmatpush.msra.mxu0 0.0
    %174 = vmatpush.msra.mxu0 0.0
    %175 = vmatpush.msra.mxu0 0.0
    %176 = vmatpush.msra.mxu0 0.0
    %177 = vmatpush.msra.mxu0 0.0
    %178 = vmatpush.msra.mxu0 0.0
    %179 = vmatpush.msra.mxu0 0.0
    %180 = vmatpush.msra.mxu0 0.0
    %181 = vmatpush.msra.mxu0 0.0
    %182 = vmatpush.msra.mxu0 %v108
    %183 = vmatpush.msra.mxu0 %v105
    %184 = vmatmul.f32.gmra.mxu0 %v119
    %v185 = vpop.f32.mrf.mxu0
    %v186 = vadd.f32 0.0, %v185
    %187 = vmatmul.f32.gmra.mxu0 %v122
    %v188 = vpop.f32.mrf.mxu0
    %v189 = vadd.f32 0.0, %v188
    %190 = vdwg.mxu0
    %v191 = vsel %vm59, %v186, 0.0
    %v192 = vsel %vm60, %v189, 0.0
    %194 = vset.pattern.permute.xlu0 0
    %195 = vperm.xlu0 %194, %v114
    %v196 = vpop.permute.xlu0 %195
    %199 = vset.pattern.permute.xlu0 0
    %200 = vperm.xlu0 %199, %v115
    %v201 = vpop.permute.xlu0 %200
    %v203 = vmul.f32 %v191, %v196
    %v204 = vmul.f32 %v192, %v201
    %v205 = vadd.f32 %v203, %v162
    %v206 = vadd.f32 %v204, %v162
    %s207 = scalar_lea.vmem [#allocation7], 16
    %208 = vst [vmem:[%s207] sm:$0xff] %v205
    %209 = vst [vmem:[%s207 + $0x8] sm:$0xff] %v206
    // Predicated region
    $region30: #{tpu_custom_call.1} parent=1 // pred_check
      _
    $region31: #{tpu_custom_call.1} parent=1 // pred_check_branch
      %211 = sbr.rel (0) target = $region33
    $region32: #{tpu_custom_call.1} parent=1 // pred_region
      %213 = vsyncadd [#allocation4], 0
      %s214 = sshll.u32 [#allocation7], 4
      %s215 = int_to_ptr.vmem [resolvable:$true] %s214
      %s216 = sshll.u32 %s5, 4
      %s217 = int_to_ptr.hbm [resolvable:$true] %s216
      %222 = dma.vmem_to_hbm [thread:$0]  %s215, 512, %s217, [#allocation4], 128, 128, 8
    $region33: #{tpu_custom_call.1} parent=1 // pred_fallthru
      _
    // Predicated region
    $region34: #{tpu_custom_call.1} parent=1 // pred_check
      _
    $region35: #{tpu_custom_call.1} parent=1 // pred_check_branch
      %224 = sbr.rel (0) target = $region37
    $region36: #{tpu_custom_call.1} parent=1 // pred_region
      %226 = dma.done [#allocation4], 512
    $region37: #{tpu_custom_call.1} parent=1 // pred_fallthru
      _
    %227 = vsyncpa [#allocation3], 1
    %228 = vsyncpa [#allocation6], 1
    %229 = vsyncpa [#allocation4], 1

</llo_original>
